<compile_context>
chip_gen: v7x
topology: tpu7x:2x2x1
jax: 0.10.0
libtpu: 0.0.40
codegen_flags: <defaults>
</compile_context>

<pallas_src>
import jax
import jax.numpy as jnp
from jax import lax
from jax.experimental import pallas as pl
from jax.experimental.pallas import tpu as pltpu

# Batch tile used once B is large enough for pipelining to matter.
_BATCH_TILE = 512


def _linear_kernel(x_ref, w_ref, b_ref, o_ref):
    # x_ref : [TB, F] VMEM tile of features
    # w_ref : [C, F]  VMEM-resident weight (PyTorch layout; contracted on F)
    # b_ref : [1, C]  VMEM-resident bias (kept 2D for lane-major layout)
    # o_ref : [TB, C] VMEM output tile
    acc = lax.dot_general(
        x_ref[...], w_ref[...],
        dimension_numbers=(((1,), (1,)), ((), ())),  # contract on F, no transpose
        preferred_element_type=jnp.float32)
    # Bias add stays in-kernel: co-issues in a VALU slot under the MXU pop.
    o_ref[...] = (acc + b_ref[...]).astype(o_ref.dtype)


def predictor_forward(features, weight, bias):
    """features: [B, F], weight: [C, F] (PyTorch layout), bias: [C] -> [B, C]."""
    B, F = features.shape
    C = weight.shape[0]
    b2d = bias.reshape(1, C)

    cost = pl.CostEstimate(
        flops=2 * B * F * C,
        bytes_accessed=4 * (B * F + C * F + C + B * C),
        transcendentals=0,
    )

    if B <= _BATCH_TILE:
        # Small batch: single kernel invocation, whole operands in VMEM,
        # no grid loop / DMA-step overhead.
        return pl.pallas_call(
            _linear_kernel,
            out_shape=jax.ShapeDtypeStruct((B, C), features.dtype),
            in_specs=[
                pl.BlockSpec(memory_space=pltpu.MemorySpace.VMEM),
                pl.BlockSpec(memory_space=pltpu.MemorySpace.VMEM),
                pl.BlockSpec(memory_space=pltpu.MemorySpace.VMEM),
            ],
            out_specs=pl.BlockSpec(memory_space=pltpu.MemorySpace.VMEM),
            cost_estimate=cost,
        )(features, weight, b2d)

    # Large batch: tile over B so BlockSpec double-buffering overlaps the
    # HBM->VMEM DMA of tile i+1 with compute of tile i. "parallel" lets the
    # second TensorCore (v7x megacore) share the batch axis. Weight and bias
    # index_maps return (0, 0) so they stay VMEM-resident across all tiles.
    tb = _BATCH_TILE
    return pl.pallas_call(
        _linear_kernel,
        out_shape=jax.ShapeDtypeStruct((B, C), features.dtype),
        grid=(pl.cdiv(B, tb),),
        in_specs=[
            pl.BlockSpec((tb, F), lambda i: (i, 0)),
            pl.BlockSpec((C, F), lambda i: (0, 0)),
            pl.BlockSpec((1, C), lambda i: (0, 0)),
        ],
        out_specs=pl.BlockSpec((tb, C), lambda i: (i, 0)),
        compiler_params=pltpu.CompilerParams(
            dimension_semantics=("parallel",)),
        cost_estimate=cost,
    )(features, weight, b2d)


if __name__ == "__main__":
    # Small shapes consistent with the module: feature_len=32, cate_num=16, batch=8.
    batch, feature_len, cate_num = 8, 32, 16

    key = jax.random.PRNGKey(0)
    k_x, k_w = jax.random.split(key)

    features = jax.random.normal(k_x, (batch, feature_len), dtype=jnp.float32)

    # Deterministic parameter init matching the module's __init__:
    #   weight ~ Normal(0, 0.01), bias = 0
    weight = 0.01 * jax.random.normal(k_w, (cate_num, feature_len), dtype=jnp.float32)
    bias = jnp.zeros((cate_num,), dtype=jnp.float32)

    out = predictor_forward(features, weight, bias)
    out = jax.block_until_ready(out)

    # Reference check in plain JAX (same semantics as torch nn.Linear).
    ref = features @ weight.T + bias
    assert out.shape == (batch, cate_num)
    assert jnp.allclose(out, ref, atol=1e-5, rtol=1e-5)

    print("KERNEL_OK")
</pallas_src>

<mosaic_0001>
module attributes {stable_mosaic.version = 11 : i64} {
  func.func @_linear_kernel(%arg0: memref<8x32xf32, #tpu.memory_space<vmem>>, %arg1: memref<16x32xf32, #tpu.memory_space<vmem>>, %arg2: memref<1x16xf32, #tpu.memory_space<vmem>>, %arg3: memref<8x16xf32, #tpu.memory_space<vmem>>) attributes {dimension_semantics = [], scalar_prefetch = 0 : i64, scratch_operands = 0 : i64, tpu.core_type = #tpu.core_type<tc>} {
    %c0 = arith.constant 0 : index
    %c0_0 = arith.constant 0 : index
    %0 = vector.load %arg0[%c0, %c0_0] : memref<8x32xf32, #tpu.memory_space<vmem>>, vector<8x32xf32>
    %c0_1 = arith.constant 0 : index
    %c0_2 = arith.constant 0 : index
    %1 = vector.load %arg1[%c0_1, %c0_2] : memref<16x32xf32, #tpu.memory_space<vmem>>, vector<16x32xf32>
    %cst = arith.constant dense<0.000000e+00> : vector<8x16xf32>
    %2 = tpu.matmul %0, %1, %cst {dimension_numbers = #tpu.dot_dimension_numbers<[1], [1], [0], [0], [0, 0, 1, 0], [], []>} : vector<8x32xf32>, vector<16x32xf32>, vector<8x16xf32> -> vector<8x16xf32>
    %c0_3 = arith.constant 0 : index
    %c0_4 = arith.constant 0 : index
    %3 = vector.load %arg2[%c0_3, %c0_4] : memref<1x16xf32, #tpu.memory_space<vmem>>, vector<1x16xf32>
    %4 = vector.broadcast %3 : vector<1x16xf32> to vector<8x16xf32>
    %5 = arith.addf %2, %4 : vector<8x16xf32>
    %c0_5 = arith.constant 0 : index
    %c0_6 = arith.constant 0 : index
    %6 = vector.load %arg3[%c0_5, %c0_6] : memref<8x16xf32, #tpu.memory_space<vmem>>, vector<8x16xf32>
    tpu.vector_store %arg3[%c0_5, %c0_6], %5 {strides = array<i32>} : memref<8x16xf32, #tpu.memory_space<vmem>>, vector<8x16xf32>,
    return
  }
}

</mosaic_0001>

<llo_original>
// kernel: tpu_custom_call.1
$region0: #{tpu_custom_call.1}
  #allocation0 [shape = 'u32[]', space=smem, size = 0x4, offset = 0x4, fixed_abs, tag = 'smem constant byte address 0x4 - core index']
  #allocation1 [shape = 'u32[144,128]{1,0:T(1,128)}', space=vmem, size = 0x12000, scoped, tag = 'internal scratch']
  %s0 = inlined_call_operand.hbm [shape: f32[8,32], index: 0, kind: input, shape index: {}]
  %s1 = inlined_call_operand.hbm [shape: f32[16,32], index: 1, kind: input, shape index: {}]
  %s2 = inlined_call_operand.vmem [shape: f32[1,16], index: 2, kind: input, shape index: {}]
  %s3 = inlined_call_operand.hbm [shape: f32[8,16], index: 3, kind: output, shape index: {}]
  %s4 = sld [smem:[#allocation0]]
  $region30: #{tpu_custom_call.1} parent=0
    _
  %s6 = ssub.s32 1, %s4
  %s7 = scalar_select 0, %s6, %s4
  $region1: #{tpu_custom_call.1} parent=0
    #allocation2 [shape = 'u8[4096]{0}', space=vmem, size = 0x1000, scoped, tag = 'input window, operand 0, single buffered']
    #allocation3 [shape = 's32[1]{0}', space=sflag, size = 0x4, scoped, tag = 'scoped memory for tpu_custom_call.1']
    #allocation4 [shape = 's32[1]{0}', space=sflag, size = 0x4, scoped, tag = 'scoped memory for tpu_custom_call.1']
    #allocation5 [shape = 'u8[8192]{0}', space=vmem, size = 0x2000, scoped, tag = 'input window, operand 1, single buffered']
    #allocation6 [shape = 's32[1]{0}', space=sflag, size = 0x4, scoped, tag = 'scoped memory for tpu_custom_call.1']
    #allocation7 [shape = 'u8[4096]{0}', space=vmem, size = 0x1000, scoped, tag = 'output window, operand 0, single buffered']
    %8 = vsyncpa [#allocation3], 0
    %9 = vsyncpa [#allocation6], 0
    %10 = vsyncpa [#allocation4], 0
    // Predicated region
    $region2: #{tpu_custom_call.1} parent=1 // pred_check
      _
    $region3: #{tpu_custom_call.1} parent=1 // pred_check_branch
      %12 = sbr.rel (0) target = $region5
    $region4: #{tpu_custom_call.1} parent=1 // pred_region
      %s14 = ssub.s32 128, 128
      %15 = vsyncadd [#allocation3], %s14
      %s17 = sshll.u32 [#allocation2], 4
      %s18 = int_to_ptr.vmem [resolvable:$true] %s17
      %20 = dma.hbm_to_vmem [thread:$0]  %s0, 128, %s18, [#allocation3]
    $region5: #{tpu_custom_call.1} parent=1 // pred_fallthru
      _
    // Predicated region
    $region6: #{tpu_custom_call.1} parent=1 // pred_check
      _
    $region7: #{tpu_custom_call.1} parent=1 // pred_check_branch
      %22 = sbr.rel (0) target = $region9
    $region8: #{tpu_custom_call.1} parent=1 // pred_region
      %s24 = ssub.s32 256, 256
      %25 = vsyncadd [#allocation6], %s24
      %s26 = sshll.u32 [#allocation5], 4
      %s27 = int_to_ptr.vmem [resolvable:$true] %s26
      %32 = dma.hbm_to_vmem [thread:$0]  %s1, 256, %s27, [#allocation6], 128, 128, 8
    $region9: #{tpu_custom_call.1} parent=1 // pred_fallthru
      _
    // Predicated region
    $region10: #{tpu_custom_call.1} parent=1 // pred_check
      _
    $region11: #{tpu_custom_call.1} parent=1 // pred_check_branch
      %34 = sbr.rel (0) target = $region13
    $region12: #{tpu_custom_call.1} parent=1 // pred_region
      _
    $region13: #{tpu_custom_call.1} parent=1 // pred_fallthru
      _
    // Predicated region
    $region14: #{tpu_custom_call.1} parent=1 // pred_check
      _
    $region15: #{tpu_custom_call.1} parent=1 // pred_check_branch
      %36 = sbr.rel (0) target = $region17
    $region16: #{tpu_custom_call.1} parent=1 // pred_region
      %37 = dma.done [#allocation3], 128
    $region17: #{tpu_custom_call.1} parent=1 // pred_fallthru
      _
    // Predicated region
    $region18: #{tpu_custom_call.1} parent=1 // pred_check
      _
    $region19: #{tpu_custom_call.1} parent=1 // pred_check_branch
      %39 = sbr.rel (0) target = $region21
    $region20: #{tpu_custom_call.1} parent=1 // pred_region
      %40 = dma.done [#allocation6], 256
    $region21: #{tpu_custom_call.1} parent=1 // pred_fallthru
      _
    %v41 = vld [vmem:[#allocation2] sm:$0xff]
    %v42 = vld [vmem:[#allocation5] sm:$0xff]
    %v43 = vld [vmem:[#allocation5 + $0x8] sm:$0xff]
    %v44 = vld [vmem:[%s2] sm:$0x1]
    %v46 = vlaneseq
    %v47 = vshrl.u32 %v46, 7
    %v48 = vsub.s32 0, %v47
    %v49 = vrot.slane %v44, %v48
    %vm51 = vcmask 261120
    %v53 = vsel %vm51, %v41, 0
    %v56 = vsel %vm51, %v42, 0
    %v59 = vsel %vm51, %v43, 0
    %61 = vmatprep.subr.mxu0 0.0
    %62 = vmatpush1.xpose.msra.mxu0 %v56
    %63 = vmatprep.subr.mxu0 0.0
    %64 = vmatpush1.xpose.msra.mxu0 %v59
    %65 = vmatprep.subr.mxu0 0.0
    %66 = vmatpush1.xpose.msra.mxu0 0.0
    %67 = vmatprep.subr.mxu0 0.0
    %68 = vmatpush1.xpose.msra.mxu0 0.0
    %69 = vmatprep.subr.mxu0 0.0
    %70 = vmatpush1.xpose.msra.mxu0 0.0
    %71 = vmatprep.subr.mxu0 0.0
    %72 = vmatpush1.xpose.msra.mxu0 0.0
    %73 = vmatprep.subr.mxu0 0.0
    %74 = vmatpush1.xpose.msra.mxu0 0.0
    %75 = vmatprep.subr.mxu0 0.0
    %76 = vmatpush1.xpose.msra.mxu0 0.0
    %77 = vmatprep.subr.mxu0 0.0
    %78 = vmatpush1.xpose.msra.mxu0 0.0
    %79 = vmatprep.subr.mxu0 0.0
    %80 = vmatpush1.xpose.msra.mxu0 0.0
    %81 = vmatprep.subr.mxu0 0.0
    %82 = vmatpush1.xpose.msra.mxu0 0.0
    %83 = vmatprep.subr.mxu0 0.0
    %84 = vmatpush1.xpose.msra.mxu0 0.0
    %85 = vmatprep.subr.mxu0 0.0
    %86 = vmatpush1.xpose.msra.mxu0 0.0
    %87 = vmatprep.subr.mxu0 0.0
    %88 = vmatpush1.xpose.msra.mxu0 0.0
    %89 = vmatprep.subr.mxu0 0.0
    %90 = vmatpush1.xpose.msra.mxu0 0.0
    %91 = vmatprep.subr.mxu0 0.0
    %92 = vmatpush1.xpose.msra.mxu0 0.0
    %93 = vmatprep.subr.mxu0 0.0
    %94 = vmatpush1.xpose.msra.mxu0 0.0
    %95 = vmatprep.subr.mxu0 0.0
    %96 = vmatpush1.xpose.msra.mxu0 0.0
    %97 = vmatprep.subr.mxu0 0.0
    %98 = vmatpush1.xpose.msra.mxu0 0.0
    %99 = vmatprep.subr.mxu0 0.0
    %100 = vmatpush1.xpose.msra.mxu0 0.0
    %101 = vmatprep.subr.mxu0 0.0
    %102 = vmatpush1.xpose.msra.mxu0 0.0
    %103 = vmatprep.subr.mxu0 0.0
    %104 = vmatpush1.xpose.msra.mxu0 0.0
    %105 = vmatprep.subr.mxu0 0.0
    %106 = vmatpush1.xpose.msra.mxu0 0.0
    %107 = vmatprep.subr.mxu0 0.0
    %108 = vmatpush1.xpose.msra.mxu0 0.0
    %109 = vmatprep.subr.mxu0 0.0
    %110 = vmatpush1.xpose.msra.mxu0 0.0
    %111 = vmatprep.subr.mxu0 0.0
    %112 = vmatpush1.xpose.msra.mxu0 0.0
    %113 = vmatprep.subr.mxu0 0.0
    %114 = vmatpush1.xpose.msra.mxu0 0.0
    %115 = vmatprep.subr.mxu0 0.0
    %116 = vmatpush1.xpose.msra.mxu0 0.0
    %117 = vmatprep.subr.mxu0 0.0
    %118 = vmatpush1.xpose.msra.mxu0 0.0
    %119 = vmatprep.subr.mxu0 0.0
    %120 = vmatpush1.xpose.msra.mxu0 0.0
    %121 = vmatprep.subr.mxu0 0.0
    %122 = vmatpush1.xpose.msra.mxu0 0.0
    %123 = vmatprep.subr.mxu0 0.0
    %124 = vmatpush1.xpose.msra.mxu0 0.0
    %125 = vmatprep.mubr.f32.mxu0 0.0
    %126 = vmatmul.mubr.f32.gmra.mrb[0].mxu0 %v53
    %v127 = vpop.f32.mrb[0].mxu0
    %v128 = vadd.f32 %v49, %v127
    %v129 = vpop.f32.mrb[0].mxu0
    %130 = vdwg.mxu0
    %vm131 = vcmask 130048
    %132 = vst.msk [vmem:[#allocation7] sm:$0xff] %vm131, %v128
    // Predicated region
    $region22: #{tpu_custom_call.1} parent=1 // pred_check
      _
    $region23: #{tpu_custom_call.1} parent=1 // pred_check_branch
      %134 = sbr.rel (0) target = $region25
    $region24: #{tpu_custom_call.1} parent=1 // pred_region
      %s136 = ssub.s32 128, 128
      %137 = vsyncadd [#allocation4], %s136
      %s139 = sshll.u32 [#allocation7], 4
      %s140 = int_to_ptr.vmem [resolvable:$true] %s139
      %142 = dma.vmem_to_hbm [thread:$0]  %s140, 128, %s3, [#allocation4]
    $region25: #{tpu_custom_call.1} parent=1 // pred_fallthru
      _
    // Predicated region
    $region26: #{tpu_custom_call.1} parent=1 // pred_check
      _
    $region27: #{tpu_custom_call.1} parent=1 // pred_check_branch
      %144 = sbr.rel (0) target = $region29
    $region28: #{tpu_custom_call.1} parent=1 // pred_region
      %145 = dma.done [#allocation4], 128
    $region29: #{tpu_custom_call.1} parent=1 // pred_fallthru
      _
    %146 = vsyncpa [#allocation3], 1
    %147 = vsyncpa [#allocation6], 1
    %148 = vsyncpa [#allocation4], 1

</llo_original>
